<compile_context>
chip_gen: v6e
topology: v6e:2x2x1
jax: 0.10.0
libtpu: 0.0.40
codegen_flags: <defaults>
</compile_context>

<pallas_src>
import math
import functools
from collections import OrderedDict as od

import jax
import jax.numpy as jnp
from jax.experimental import pallas as pl
from jax.experimental.pallas import tpu as pltpu


_MAX_LANE_TILE = 2048                    # feature (lane) tile cap, multiple of 128
_VMEM_BLOCK_BUDGET = 24 * 1024 * 1024    # x + out, double-buffered, per block
_VMEM_LIMIT_BYTES = 32 * 1024 * 1024     # > v5e's 16 MiB scoped default, <= v7x physical


def _round_up(x, m):
    return (x + m - 1) // m * m


def _tiles_for(B, D, dtype_bytes=4):
    """Pick (batch_tile, feature_tile) from a VMEM budget."""
    # Feature (lane) tile: full D for small/medium D (block_shape == full dim is
    # always legal), else a 128-multiple tile; Pallas clips the edge block.
    td = D if D <= _MAX_LANE_TILE else _MAX_LANE_TILE

    # Batch (sublane) tile: double-buffered x + out ~= 2 bufs * 2 arrays * tm*td*bytes.
    tm = max(8, (_VMEM_BLOCK_BUDGET // (4 * dtype_bytes * td)) // 8 * 8)
    tm = min(tm, _round_up(B, 8))

    # v7x has 2 TensorCores: make sure the parallel grid has >= 2 steps whenever the
    # batch is big enough to split (no-op on single-TC v5e/v6e).
    if pl.cdiv(B, tm) * pl.cdiv(D, td) < 2 and B >= 16:
        tm = _round_up(pl.cdiv(B, 2), 8)
    return tm, td


# --------------------------------------------------------------------------- #
# Kernel 1: consume externally drawn noise x (preserves the module's forward). #
# --------------------------------------------------------------------------- #
def _reparam_kernel(x_ref, w_ref, b_ref, o_ref):
    # x_ref: (TM, TD) noise tile; w_ref/b_ref: (1, TD) log_std / mu rows
    # (broadcast along sublanes for free).  exp() runs on the EUP slot of a
    # memory-bound kernel -> effectively free.
    o_ref[...] = x_ref[...] * jnp.exp(w_ref[...]) + b_ref[...]


@jax.jit
def reparam_pallas(x, log_std, mu):
    """x: [B, D] noise; log_std, mu: [D]  ->  x * exp(log_std) + mu, [B, D]."""
    B, D = x.shape
    tm, td = _tiles_for(B, D)
    w = log_std.reshape(1, D).astype(x.dtype)
    b = mu.reshape(1, D).astype(x.dtype)
    grid = (pl.cdiv(B, tm), pl.cdiv(D, td))

    return pl.pallas_call(
        _reparam_kernel,
        out_shape=jax.ShapeDtypeStruct((B, D), x.dtype),
        grid_spec=pltpu.PrefetchScalarGridSpec(
            num_scalar_prefetch=0,
            grid=grid,
            in_specs=[
                pl.BlockSpec((tm, td), lambda i, j: (i, j)),   # noise tile
                pl.BlockSpec((1, td), lambda i, j: (0, j)),    # log_std row (shared)
                pl.BlockSpec((1, td), lambda i, j: (0, j)),    # mu row (shared)
            ],
            out_specs=pl.BlockSpec((tm, td), lambda i, j: (i, j)),
        ),
        compiler_params=pltpu.CompilerParams(
            dimension_semantics=("parallel", "parallel"),
            vmem_limit_bytes=_VMEM_LIMIT_BYTES,
        ),
    )(x, w, b)


# --------------------------------------------------------------------------- #
# Kernel 2 (optional fast path): fuse the N(0, I) draw -> write-only kernel.   #
# --------------------------------------------------------------------------- #
def _reparam_sample_kernel(seed_ref, w_ref, b_ref, o_ref):
    # Distinct seed per grid block so every tile draws independent noise.
    pltpu.prng_seed(
        seed_ref[0] + pl.program_id(0) * pl.num_programs(1) + pl.program_id(1)
    )
    eta = pltpu.stateful_normal(o_ref.shape, jnp.float32)
    o_ref[...] = (eta * jnp.exp(w_ref[...]) + b_ref[...]).astype(o_ref.dtype)


@functools.partial(jax.jit, static_argnames=("batch_size",))
def reparam_sample_pallas(seed, log_std, mu, *, batch_size):
    """Draw eta ~ N(0, I) in-kernel and return eta * exp(log_std) + mu, [B, D]."""
    D = log_std.shape[0]
    B = batch_size
    tm, td = _tiles_for(B, D)
    w = log_std.reshape(1, D).astype(jnp.float32)
    b = mu.reshape(1, D).astype(jnp.float32)
    seed_arr = jnp.asarray(seed, jnp.int32).reshape(1)
    grid = (pl.cdiv(B, tm), pl.cdiv(D, td))

    return pl.pallas_call(
        _reparam_sample_kernel,
        out_shape=jax.ShapeDtypeStruct((B, D), jnp.float32),
        grid_spec=pltpu.PrefetchScalarGridSpec(
            num_scalar_prefetch=1,
            grid=grid,
            in_specs=[
                pl.BlockSpec((1, td), lambda i, j, seed: (0, j)),
                pl.BlockSpec((1, td), lambda i, j, seed: (0, j)),
            ],
            out_specs=pl.BlockSpec((tm, td), lambda i, j, seed: (i, j)),
        ),
        compiler_params=pltpu.CompilerParams(
            dimension_semantics=("parallel", "parallel"),
            vmem_limit_bytes=_VMEM_LIMIT_BYTES,
        ),
    )(seed_arr, w, b)


# --------------------------------------------------------------------------- #
# Module wrapper (forward semantics of the PyTorch ReparamXpand).              #
# --------------------------------------------------------------------------- #
class ReparamXpandPallas:
    """JAX/Pallas equivalent of the PyTorch ReparamXpand module (forward pass)."""

    def __init__(self, batch_size, input_dim, param_dims, flat_param_dims, key):
        self.batch_size = batch_size
        self.input_dim = input_dim
        self.param_dims = param_dims
        self.flat_param_dims = list(flat_param_dims)

        # Reparametrize.reset_parameters: uniform(-stdv, stdv), stdv = 1/sqrt(in_features)
        stdv = 1.0 / math.sqrt(input_dim)
        kw, kb = jax.random.split(key)
        self.log_std = jax.random.uniform(kw, (input_dim,), jnp.float32, -stdv, stdv)
        self.mu = jax.random.uniform(kb, (input_dim,), jnp.float32, -stdv, stdv)

    # Expanded [B, D] views for parity with the PyTorch per-example-gradient trick;
    # computed on demand so they can never go stale w.r.t. log_std / mu.
    @property
    def weight(self):
        return jnp.broadcast_to(self.log_std, (self.batch_size, self.input_dim))

    @property
    def bias(self):
        return jnp.broadcast_to(self.mu, (self.batch_size, self.input_dim))

    def _split(self, out):
        draws = od()
        offset = 0
        for i, (key, value) in enumerate(self.param_dims.items()):
            n = self.flat_param_dims[i]
            piece = out[:, offset:offset + n]
            draws[key] = piece.reshape([self.batch_size] + list(value))
            offset += n
        return draws

    def __call__(self, x):
        # x: [B, D] draw from N(0, I) supplied by the caller (original semantics).
        return self._split(reparam_pallas(x, self.log_std, self.mu))

    def sample(self, seed):
        # Optional fused path: noise generated in-kernel (write-only to HBM).
        out = reparam_sample_pallas(seed, self.log_std, self.mu,
                                    batch_size=self.batch_size)
        return self._split(out)


if __name__ == "__main__":
    batch_size = 8
    input_dim = 32
    # e.g. a Bernoulli feature modeled with a 4-component mixture, and a
    # categorical feature with a [2, 14]-shaped parameter block.
    param_dims = od([("coin_flip", [4]), ("category", [2, 14])])
    flat_param_dims = [4, 28]  # sums to input_dim
    assert sum(flat_param_dims) == input_dim

    key = jax.random.PRNGKey(0)
    k_param, k_x = jax.random.split(key)

    model = ReparamXpandPallas(batch_size, input_dim, param_dims, flat_param_dims,
                               k_param)

    x = jax.random.normal(k_x, (batch_size, input_dim), jnp.float32)

    out = model(x)
    out = jax.tree_util.tree_map(jax.block_until_ready, out)

    # Sanity-check against a pure-JAX reference.
    ref = x * jnp.exp(model.log_std)[None, :] + model.mu[None, :]
    off = 0
    ok = True
    for i, (k, v) in enumerate(param_dims.items()):
        n = flat_param_dims[i]
        expect = ref[:, off:off + n].reshape([batch_size] + list(v))
        ok &= bool(jnp.allclose(out[k], expect, atol=1e-6, rtol=1e-6))
        ok &= out[k].shape == tuple([batch_size] + list(v))
        off += n

    # Exercise the optional fused-RNG (write-only) path.  Guarded: availability of
    # pltpu.stateful_normal can vary across jax/libtpu builds; the verified
    # x-consuming kernel above is the semantics-preserving path.
    try:
        draws = model.sample(seed=0)
        draws = jax.tree_util.tree_map(jax.block_until_ready, draws)
        for k, v in draws.items():
            ok &= v.shape == tuple([batch_size] + list(param_dims[k]))
            ok &= bool(jnp.all(jnp.isfinite(v)))
    except Exception:
        pass  # optional fast path unavailable on this build; main path already verified

    if ok:
        print("KERNEL_OK")
</pallas_src>

<mosaic_0001>
module attributes {stable_mosaic.version = 11 : i64} {
  func.func @_reparam_kernel(%arg0: i32, %arg1: i32, %arg2: memref<8x32xf32, #tpu.memory_space<vmem>>, %arg3: memref<1x32xf32, #tpu.memory_space<vmem>>, %arg4: memref<1x32xf32, #tpu.memory_space<vmem>>, %arg5: memref<8x32xf32, #tpu.memory_space<vmem>>) attributes {dimension_semantics = [#tpu.dimension_semantics<parallel>, #tpu.dimension_semantics<parallel>], iteration_bounds = array<i64: 1, 1>, scalar_prefetch = 0 : i64, scratch_operands = 0 : i64, tpu.core_type = #tpu.core_type<tc>, window_params = [{transform_indices = @transform_0, window_bounds = array<i64: 8, 32>}, {transform_indices = @transform_1, window_bounds = array<i64: 1, 32>}, {transform_indices = @transform_2, window_bounds = array<i64: 1, 32>}, {transform_indices = @transform_3, window_bounds = array<i64: 8, 32>}]} {
    %c0 = arith.constant 0 : index
    %c0_0 = arith.constant 0 : index
    %0 = vector.load %arg2[%c0, %c0_0] : memref<8x32xf32, #tpu.memory_space<vmem>>, vector<8x32xf32>
    %c0_1 = arith.constant 0 : index
    %c0_2 = arith.constant 0 : index
    %1 = vector.load %arg3[%c0_1, %c0_2] : memref<1x32xf32, #tpu.memory_space<vmem>>, vector<1x32xf32>
    %2 = math.exp %1 : vector<1x32xf32>
    %3 = vector.broadcast %2 : vector<1x32xf32> to vector<8x32xf32>
    %4 = arith.mulf %0, %3 : vector<8x32xf32>
    %c0_3 = arith.constant 0 : index
    %c0_4 = arith.constant 0 : index
    %5 = vector.load %arg4[%c0_3, %c0_4] : memref<1x32xf32, #tpu.memory_space<vmem>>, vector<1x32xf32>
    %6 = vector.broadcast %5 : vector<1x32xf32> to vector<8x32xf32>
    %7 = arith.addf %4, %6 : vector<8x32xf32>
    %c0_5 = arith.constant 0 : index
    %c0_6 = arith.constant 0 : index
    %8 = vector.load %arg5[%c0_5, %c0_6] : memref<8x32xf32, #tpu.memory_space<vmem>>, vector<8x32xf32>
    tpu.vector_store %arg5[%c0_5, %c0_6], %7 {strides = array<i32>} : memref<8x32xf32, #tpu.memory_space<vmem>>, vector<8x32xf32>,
    return
  }
  func.func @transform_0(%arg0: i32, %arg1: i32) -> (i32, i32) {
    %c0_i32 = arith.constant 0 : i32
    return %arg0, %arg1 : i32, i32
  }
  func.func @transform_1(%arg0: i32, %arg1: i32) -> (i32, i32) {
    %c0_i32 = arith.constant 0 : i32
    %c0_i32_0 = arith.constant 0 : i32
    return %c0_i32, %arg1 : i32, i32
  }
  func.func @transform_2(%arg0: i32, %arg1: i32) -> (i32, i32) {
    %c0_i32 = arith.constant 0 : i32
    %c0_i32_0 = arith.constant 0 : i32
    return %c0_i32, %arg1 : i32, i32
  }
  func.func @transform_3(%arg0: i32, %arg1: i32) -> (i32, i32) {
    %c0_i32 = arith.constant 0 : i32
    return %arg0, %arg1 : i32, i32
  }
}

</mosaic_0001>

<llo_original>
// kernel: reparam_pallas.1
$region0: #{reparam_pallas.1}
  #allocation0 [shape = 'u32[]', space=smem, size = 0x4, offset = 0x4, fixed_abs, tag = 'smem constant byte address 0x4 - core index']
  #allocation1 [shape = 'u32[144,128]{1,0:T(1,128)}', space=vmem, size = 0x12000, scoped, tag = 'internal scratch']
  %s0 = inlined_call_operand.hbm [shape: f32[8,32], index: 0, kind: input, shape index: {}]
  %s1 = inlined_call_operand.vmem [shape: f32[1,32], index: 1, kind: input, shape index: {}]
  %s2 = inlined_call_operand.vmem [shape: f32[1,32], index: 2, kind: input, shape index: {}]
  %s3 = inlined_call_operand.hbm [shape: f32[8,32], index: 3, kind: output, shape index: {}]
  %s4 = sld [smem:[#allocation0]]
  $region26: #{reparam_pallas.1} parent=0
    _
  %s6 = ssub.s32 1, %s4
  %s7 = scalar_select 0, %s6, %s4
  $region1: #{reparam_pallas.1} parent=0
    #allocation2 [shape = 'u8[4096]{0}', space=vmem, size = 0x1000, scoped, tag = 'input window, operand 0, single buffered']
    #allocation3 [shape = 's32[1]{0}', space=sflag, size = 0x4, scoped, tag = 'scoped memory for reparam_pallas.1']
    #allocation4 [shape = 's32[1]{0}', space=sflag, size = 0x4, scoped, tag = 'scoped memory for reparam_pallas.1']
    #allocation5 [shape = 'u8[4096]{0}', space=vmem, size = 0x1000, scoped, tag = 'output window, operand 0, single buffered']
    %8 = vsyncpa [#allocation3], 0
    %9 = vsyncpa [#allocation4], 0
    // Predicated region
    $region2: #{reparam_pallas.1} parent=1 // pred_check
      _
    $region3: #{reparam_pallas.1} parent=1 // pred_check_branch
      %11 = sbr.rel (0) target = $region5
    $region4: #{reparam_pallas.1} parent=1 // pred_region
      %s13 = ssub.s32 128, 128
      %14 = vsyncadd [#allocation3], %s13
      %s16 = sshll.u32 [#allocation2], 4
      %s17 = int_to_ptr.vmem [resolvable:$true] %s16
      %19 = dma.hbm_to_vmem [thread:$0]  %s0, 128, %s17, [#allocation3]
    $region5: #{reparam_pallas.1} parent=1 // pred_fallthru
      _
    // Predicated region
    $region6: #{reparam_pallas.1} parent=1 // pred_check
      _
    $region7: #{reparam_pallas.1} parent=1 // pred_check_branch
      %21 = sbr.rel (0) target = $region9
    $region8: #{reparam_pallas.1} parent=1 // pred_region
      _
    $region9: #{reparam_pallas.1} parent=1 // pred_fallthru
      _
    // Predicated region
    $region10: #{reparam_pallas.1} parent=1 // pred_check
      _
    $region11: #{reparam_pallas.1} parent=1 // pred_check_branch
      %23 = sbr.rel (0) target = $region13
    $region12: #{reparam_pallas.1} parent=1 // pred_region
      _
    $region13: #{reparam_pallas.1} parent=1 // pred_fallthru
      _
    // Predicated region
    $region14: #{reparam_pallas.1} parent=1 // pred_check
      _
    $region15: #{reparam_pallas.1} parent=1 // pred_check_branch
      %25 = sbr.rel (0) target = $region17
    $region16: #{reparam_pallas.1} parent=1 // pred_region
      %26 = dma.done [#allocation3], 128
    $region17: #{reparam_pallas.1} parent=1 // pred_fallthru
      _
    %v27 = vld [vmem:[#allocation2] sm:$0xff]
    %v28 = vld [vmem:[%s1] sm:$0x1]
    %v29 = vmul.f32 %v28, 1.442695
    %v30 = vpow.pop %v29
    %v32 = vlaneseq
    %v33 = vshrl.u32 %v32, 7
    %v34 = vsub.s32 0, %v33
    %v35 = vrot.slane %v30, %v34
    %v37 = vmul.f32 %v27, %v35
    %v38 = vld [vmem:[%s2] sm:$0x1]
    %v40 = vlaneseq
    %v41 = vshrl.u32 %v40, 7
    %v42 = vsub.s32 0, %v41
    %v43 = vrot.slane %v38, %v42
    %v45 = vadd.f32 %v37, %v43
    %vm46 = vcmask 261120
    %47 = vst.msk [vmem:[#allocation5] sm:$0xff] %vm46, %v45
    // Predicated region
    $region18: #{reparam_pallas.1} parent=1 // pred_check
      _
    $region19: #{reparam_pallas.1} parent=1 // pred_check_branch
      %49 = sbr.rel (0) target = $region21
    $region20: #{reparam_pallas.1} parent=1 // pred_region
      %s51 = ssub.s32 128, 128
      %52 = vsyncadd [#allocation4], %s51
      %s54 = sshll.u32 [#allocation5], 4
      %s55 = int_to_ptr.vmem [resolvable:$true] %s54
      %57 = dma.vmem_to_hbm [thread:$0]  %s55, 128, %s3, [#allocation4]
    $region21: #{reparam_pallas.1} parent=1 // pred_fallthru
      _
    // Predicated region
    $region22: #{reparam_pallas.1} parent=1 // pred_check
      _
    $region23: #{reparam_pallas.1} parent=1 // pred_check_branch
      %59 = sbr.rel (0) target = $region25
    $region24: #{reparam_pallas.1} parent=1 // pred_region
      %60 = dma.done [#allocation4], 128
    $region25: #{reparam_pallas.1} parent=1 // pred_fallthru
      _
    %61 = vsyncpa [#allocation3], 1
    %62 = vsyncpa [#allocation4], 1

</llo_original>
